<compile_context>
chip_gen: v5e
topology: v5e:2x2
jax: 0.10.0
libtpu: 0.0.40
codegen_flags: <defaults>
</compile_context>

<pallas_src>
import jax
import jax.numpy as jnp
from jax.experimental import pallas as pl
from jax.experimental.pallas import tpu as pltpu


def ffnn_kernel(x_ref, w1_ref, b1_ref, w2_ref, b2_ref, o_ref):
    # x arrives as f32 (half the end-to-end HBM bytes of streaming a separately
    # cast bf16 copy); cast to bf16 on the VPU -- hidden under the x DMA.
    x = x_ref[...].astype(jnp.bfloat16)
    # fc1: (TB, IN)bf16 @ (IN, H)bf16 -> f32 accumulate on the MXU.
    h = jnp.dot(x, w1_ref[...], preferred_element_type=jnp.float32)
    h = jnp.maximum(h + b1_ref[...], 0.0)                       # bias + ReLU in f32
    # fc2: (TB, H)bf16 @ (H, Cp)bf16 -> f32 accumulate (Cp = lane-dense 128).
    logits = jnp.dot(h.astype(jnp.bfloat16), w2_ref[...],
                     preferred_element_type=jnp.float32)
    logits = logits + b2_ref[...]                               # padded lanes ~ -1e30
    # Numerically-stable softmax over all 128 lanes (padded lanes -> exp ~= 0).
    m = jnp.max(logits, axis=-1, keepdims=True)
    e = jnp.exp(logits - m)
    denom = jnp.sum(e, axis=-1, keepdims=True)
    o_ref[...] = (e * pl.reciprocal(denom, approx=True)).astype(o_ref.dtype)


def prep_params(w1, b1, w2, b2):
    """One-time weight prep (hoisted out of the per-call path).

    Casts MXU operands to bf16 and pads the class dimension to a lane-dense
    128 (zero w2 columns; -1e30 b2 lanes so padded logits vanish in softmax,
    sound because logits/accumulation stay in f32).  Reuse the result across
    calls.
    """
    in_size, hidden = w1.shape
    num_classes = w2.shape[1]
    cp = pl.cdiv(num_classes, 128) * 128
    w1b = jnp.asarray(w1, jnp.bfloat16)
    b1r = jnp.asarray(b1, jnp.float32).reshape(1, hidden)
    w2p = jnp.zeros((hidden, cp), jnp.bfloat16).at[:, :num_classes].set(
        jnp.asarray(w2, jnp.bfloat16))
    b2p = jnp.full((1, cp), -1e30, jnp.float32).at[:, :num_classes].set(
        jnp.asarray(b2, jnp.float32).reshape(1, num_classes))
    return dict(w1=w1b, b1=b1r, w2=w2p, b2=b2p, num_classes=num_classes)


def _default_tiling():
    """Pick (batch_tile, vmem_limit_bytes) per TPU generation."""
    vmem_bytes = 128 * 1024 * 1024
    try:
        vmem_bytes = int(pltpu.get_tpu_info().vmem_capacity_bytes)
    except Exception:
        pass
    if vmem_bytes <= 64 * 1024 * 1024:            # v7x: 64 MiB VMEM per TensorCore
        return 256, 48 * 1024 * 1024
    return 512, 64 * 1024 * 1024                  # v5e / v6e: 128 MiB physical VMEM


def feedforward_nn(x, params, *, batch_tile=None, vmem_limit_bytes=None):
    """x: (B, IN) f32; params: output of prep_params(). Returns (B, C) f32 probs."""
    B, IN = x.shape
    w1b, b1r, w2p, b2p = params["w1"], params["b1"], params["w2"], params["b2"]
    H = w1b.shape[1]
    Cp = w2p.shape[1]
    C = params["num_classes"]

    d_tb, d_vmem = _default_tiling()
    batch_tile = d_tb if batch_tile is None else batch_tile
    vmem_limit_bytes = d_vmem if vmem_limit_bytes is None else vmem_limit_bytes

    # Batch tile: multiple of 8 sublanes, capped so the grid has >= 2 steps
    # whenever B allows it.  No batch padding -- Pallas masks the ragged block.
    half_b = pl.cdiv(pl.cdiv(B, 2), 8) * 8
    tb = max(8, min(batch_tile, half_b))
    grid = (pl.cdiv(B, tb),)

    def run(single_buffer_weights):
        def resident(shape):
            # Constant index_map => DMA'd into VMEM once, stays resident.
            if single_buffer_weights:
                return pl.BlockSpec(shape, lambda i: (0, 0),
                                    pipeline_mode=pl.Buffered(1))
            return pl.BlockSpec(shape, lambda i: (0, 0))

        return pl.pallas_call(
            ffnn_kernel,
            out_shape=jax.ShapeDtypeStruct((B, Cp), jnp.float32),
            grid=grid,
            in_specs=[
                pl.BlockSpec((tb, IN), lambda i: (i, 0)),   # x tile: streamed (f32)
                resident((IN, H)),                          # w1 (bf16)
                resident((1, H)),                           # b1 (f32)
                resident((H, Cp)),                          # w2 (bf16, lane-padded)
                resident((1, Cp)),                          # b2 (f32, -1e30 pad)
            ],
            out_specs=pl.BlockSpec((tb, Cp), lambda i: (i, 0)),
            compiler_params=pltpu.CompilerParams(
                dimension_semantics=("parallel",),
                vmem_limit_bytes=vmem_limit_bytes,
            ),
        )(x, w1b, b1r, w2p, b2p)

    try:
        out = run(single_buffer_weights=True)
    except Exception:
        # jax build without BlockSpec.pipeline_mode / Buffered(1) support:
        # fall back to default double-buffering (correct, slightly more VMEM).
        out = run(single_buffer_weights=False)

    return out[:, :C]


def init_params(key, input_size, hidden_size, num_classes):
    # Deterministic init mimicking nn.Linear's uniform(-1/sqrt(fan_in), 1/sqrt(fan_in)).
    k1, k2, k3, k4 = jax.random.split(key, 4)
    bound1 = 1.0 / jnp.sqrt(input_size)
    bound2 = 1.0 / jnp.sqrt(hidden_size)
    w1 = jax.random.uniform(k1, (input_size, hidden_size), jnp.float32, -bound1, bound1)
    b1 = jax.random.uniform(k2, (1, hidden_size), jnp.float32, -bound1, bound1)
    w2 = jax.random.uniform(k3, (hidden_size, num_classes), jnp.float32, -bound2, bound2)
    b2 = jax.random.uniform(k4, (1, num_classes), jnp.float32, -bound2, bound2)
    return w1, b1, w2, b2


def reference_bf16(x, w1, b1, w2, b2):
    """Plain-JAX reference using the same bf16-matmul / f32-accumulate recipe."""
    h = jnp.dot(x.astype(jnp.bfloat16), w1.astype(jnp.bfloat16),
                preferred_element_type=jnp.float32) + b1.reshape(1, -1)
    h = jnp.maximum(h, 0.0)
    logits = jnp.dot(h.astype(jnp.bfloat16), w2.astype(jnp.bfloat16),
                     preferred_element_type=jnp.float32) + b2.reshape(1, -1)
    return jax.nn.softmax(logits, axis=1)


if __name__ == "__main__":
    # Small shapes consistent with the module: TF-IDF features -> hidden=128 -> 2 classes.
    batch = 10            # not a tile multiple: exercises the ragged final block path
    input_size = 256      # stand-in for the (up to 10000) TF-IDF feature dim
    hidden_size = 128
    num_classes = 2

    key = jax.random.PRNGKey(0)
    kx, kp = jax.random.split(key)
    x = jax.random.uniform(kx, (batch, input_size), jnp.float32)  # TF-IDF-like nonneg
    w1, b1, w2, b2 = init_params(kp, input_size, hidden_size, num_classes)

    params = prep_params(w1, b1, w2, b2)          # one-time weight prep, reused per call
    out = jax.block_until_ready(feedforward_nn(x, params))
    assert out.shape == (batch, num_classes)

    # Reference checks: tight vs bf16-matmul reference, loose vs pure-f32 math.
    ref_bf16 = reference_bf16(x, w1, b1, w2, b2)
    ref_f32 = jax.nn.softmax(jnp.maximum(x @ w1 + b1, 0.0) @ w2 + b2, axis=1)

    assert jnp.allclose(out, ref_bf16, atol=2e-3, rtol=2e-3), "mismatch vs bf16 reference"
    assert jnp.allclose(out, ref_f32, atol=3e-2), "mismatch vs f32 reference"
    assert jnp.allclose(jnp.sum(out, axis=1), 1.0, atol=2e-3), "softmax rows do not sum to 1"

    print("KERNEL_OK")
</pallas_src>

<mosaic_0001>
module attributes {stable_mosaic.version = 11 : i64} {
  func.func @ffnn_kernel(%arg0: i32, %arg1: memref<8x256xf32, #tpu.memory_space<vmem>>, %arg2: memref<256x128xbf16, #tpu.memory_space<vmem>>, %arg3: memref<1x128xf32, #tpu.memory_space<vmem>>, %arg4: memref<128x128xbf16, #tpu.memory_space<vmem>>, %arg5: memref<1x128xf32, #tpu.memory_space<vmem>>, %arg6: memref<8x128xf32, #tpu.memory_space<vmem>>) attributes {dimension_semantics = [#tpu.dimension_semantics<parallel>], iteration_bounds = array<i64: 2>, scalar_prefetch = 0 : i64, scratch_operands = 0 : i64, tpu.core_type = #tpu.core_type<tc>, window_params = [{transform_indices = @transform_0, window_bounds = array<i64: 8, 256>}, {pipeline_mode = #tpu.pipeline_mode<synchronous>, transform_indices = @transform_1, window_bounds = array<i64: 256, 128>}, {pipeline_mode = #tpu.pipeline_mode<synchronous>, transform_indices = @transform_2, window_bounds = array<i64: 1, 128>}, {pipeline_mode = #tpu.pipeline_mode<synchronous>, transform_indices = @transform_3, window_bounds = array<i64: 128, 128>}, {pipeline_mode = #tpu.pipeline_mode<synchronous>, transform_indices = @transform_4, window_bounds = array<i64: 1, 128>}, {transform_indices = @transform_5, window_bounds = array<i64: 8, 128>}]} {
    %c0 = arith.constant 0 : index
    %c0_0 = arith.constant 0 : index
    %0 = vector.load %arg1[%c0, %c0_0] : memref<8x256xf32, #tpu.memory_space<vmem>>, vector<8x256xf32>
    %1 = arith.truncf %0 : vector<8x256xf32> to vector<8x256xbf16>
    %c0_1 = arith.constant 0 : index
    %c0_2 = arith.constant 0 : index
    %2 = vector.load %arg2[%c0_1, %c0_2] : memref<256x128xbf16, #tpu.memory_space<vmem>>, vector<256x128xbf16>
    %cst = arith.constant dense<0.000000e+00> : vector<8x128xf32>
    %3 = tpu.matmul %1, %2, %cst {dimension_numbers = #tpu.dot_dimension_numbers<[1], [0], [0], [1], [0, 0, 1, 1], [], []>} : vector<8x256xbf16>, vector<256x128xbf16>, vector<8x128xf32> -> vector<8x128xf32>
    %c0_3 = arith.constant 0 : index
    %c0_4 = arith.constant 0 : index
    %4 = vector.load %arg3[%c0_3, %c0_4] : memref<1x128xf32, #tpu.memory_space<vmem>>, vector<1x128xf32>
    %5 = vector.broadcast %4 : vector<1x128xf32> to vector<8x128xf32>
    %6 = arith.addf %3, %5 : vector<8x128xf32>
    %cst_5 = arith.constant 0.000000e+00 : f32
    %7 = vector.broadcast %cst_5 : f32 to vector<8x128xf32>
    %8 = arith.maximumf %6, %7 : vector<8x128xf32>
    %9 = arith.truncf %8 : vector<8x128xf32> to vector<8x128xbf16>
    %c0_6 = arith.constant 0 : index
    %c0_7 = arith.constant 0 : index
    %10 = vector.load %arg4[%c0_6, %c0_7] : memref<128x128xbf16, #tpu.memory_space<vmem>>, vector<128x128xbf16>
    %cst_8 = arith.constant dense<0.000000e+00> : vector<8x128xf32>
    %11 = tpu.matmul %9, %10, %cst_8 {dimension_numbers = #tpu.dot_dimension_numbers<[1], [0], [0], [1], [0, 0, 1, 1], [], []>} : vector<8x128xbf16>, vector<128x128xbf16>, vector<8x128xf32> -> vector<8x128xf32>
    %c0_9 = arith.constant 0 : index
    %c0_10 = arith.constant 0 : index
    %12 = vector.load %arg5[%c0_9, %c0_10] : memref<1x128xf32, #tpu.memory_space<vmem>>, vector<1x128xf32>
    %13 = vector.broadcast %12 : vector<1x128xf32> to vector<8x128xf32>
    %14 = arith.addf %11, %13 : vector<8x128xf32>
    %cst_11 = arith.constant dense<0xFF800000> : vector<8xf32>
    %15 = vector.multi_reduction <maximumf>, %14, %cst_11 [1] : vector<8x128xf32> to vector<8xf32>
    %16 = vector.shape_cast %15 : vector<8xf32> to vector<8x1xf32>
    %17 = vector.broadcast %16 : vector<8x1xf32> to vector<8x128xf32>
    %18 = arith.subf %14, %17 : vector<8x128xf32>
    %19 = math.exp %18 : vector<8x128xf32>
    %cst_12 = arith.constant dense<0.000000e+00> : vector<8xf32>
    %20 = vector.multi_reduction <add>, %19, %cst_12 [1] : vector<8x128xf32> to vector<8xf32>
    %21 = vector.shape_cast %20 : vector<8xf32> to vector<8x1xf32>
    %22 = tpu.reciprocal %21 {approx = true} : vector<8x1xf32> -> vector<8x1xf32>
    %23 = vector.broadcast %22 : vector<8x1xf32> to vector<8x128xf32>
    %24 = arith.mulf %19, %23 : vector<8x128xf32>
    %c0_13 = arith.constant 0 : index
    %c0_14 = arith.constant 0 : index
    %25 = vector.load %arg6[%c0_13, %c0_14] : memref<8x128xf32, #tpu.memory_space<vmem>>, vector<8x128xf32>
    tpu.vector_store %arg6[%c0_13, %c0_14], %24 {strides = array<i32>} : memref<8x128xf32, #tpu.memory_space<vmem>>, vector<8x128xf32>,
    return
  }
  func.func @transform_0(%arg0: i32) -> (i32, i32) {
    %c0_i32 = arith.constant 0 : i32
    %c0_i32_0 = arith.constant 0 : i32
    return %arg0, %c0_i32 : i32, i32
  }
  func.func @transform_1(%arg0: i32) -> (i32, i32) {
    %c0_i32 = arith.constant 0 : i32
    %c0_i32_0 = arith.constant 0 : i32
    %c0_i32_1 = arith.constant 0 : i32
    return %c0_i32, %c0_i32_0 : i32, i32
  }
  func.func @transform_2(%arg0: i32) -> (i32, i32) {
    %c0_i32 = arith.constant 0 : i32
    %c0_i32_0 = arith.constant 0 : i32
    %c0_i32_1 = arith.constant 0 : i32
    return %c0_i32, %c0_i32_0 : i32, i32
  }
  func.func @transform_3(%arg0: i32) -> (i32, i32) {
    %c0_i32 = arith.constant 0 : i32
    %c0_i32_0 = arith.constant 0 : i32
    %c0_i32_1 = arith.constant 0 : i32
    return %c0_i32, %c0_i32_0 : i32, i32
  }
  func.func @transform_4(%arg0: i32) -> (i32, i32) {
    %c0_i32 = arith.constant 0 : i32
    %c0_i32_0 = arith.constant 0 : i32
    %c0_i32_1 = arith.constant 0 : i32
    return %c0_i32, %c0_i32_0 : i32, i32
  }
  func.func @transform_5(%arg0: i32) -> (i32, i32) {
    %c0_i32 = arith.constant 0 : i32
    %c0_i32_0 = arith.constant 0 : i32
    return %arg0, %c0_i32 : i32, i32
  }
}

module attributes {stable_mosaic.version = 11 : i64} {
  func.func @ffnn_kernel(%arg0: i32, %arg1: memref<8x256xf32, #tpu.memory_space<vmem>>, %arg2: memref<256x128xbf16, #tpu.memory_space<vmem>>, %arg3: memref<1x128xf32, #tpu.memory_space<vmem>>, %arg4: memref<128x128xbf16, #tpu.memory_space<vmem>>, %arg5: memref<1x128xf32, #tpu.memory_space<vmem>>, %arg6: memref<8x128xf32, #tpu.memory_space<vmem>>) attributes {dimension_semantics = [#tpu.dimension_semantics<parallel>], iteration_bounds = array<i64: 2>, scalar_prefetch = 0 : i64, scratch_operands = 0 : i64, tpu.core_type = #tpu.core_type<tc>, window_params = [{transform_indices = @transform_0, window_bounds = array<i64: 8, 256>}, {pipeline_mode = #tpu.pipeline_mode<synchronous>, transform_indices = @transform_1, window_bounds = array<i64: 256, 128>}, {pipeline_mode = #tpu.pipeline_mode<synchronous>, transform_indices = @transform_2, window_bounds = array<i64: 1, 128>}, {pipeline_mode = #tpu.pipeline_mode<synchronous>, transform_indices = @transform_3, window_bounds = array<i64: 128, 128>}, {pipeline_mode = #tpu.pipeline_mode<synchronous>, transform_indices = @transform_4, window_bounds = array<i64: 1, 128>}, {transform_indices = @transform_5, window_bounds = array<i64: 8, 128>}]} {
    %c0 = arith.constant 0 : index
    %c0_0 = arith.constant 0 : index
    %0 = vector.load %arg1[%c0, %c0_0] : memref<8x256xf32, #tpu.memory_space<vmem>>, vector<8x256xf32>
    %1 = arith.truncf %0 : vector<8x256xf32> to vector<8x256xbf16>
    %c0_1 = arith.constant 0 : index
    %c0_2 = arith.constant 0 : index
    %2 = vector.load %arg2[%c0_1, %c0_2] : memref<256x128xbf16, #tpu.memory_space<vmem>>, vector<256x128xbf16>
    %cst = arith.constant dense<0.000000e+00> : vector<8x128xf32>
    %3 = tpu.matmul %1, %2, %cst {dimension_numbers = #tpu.dot_dimension_numbers<[1], [0], [0], [1], [0, 0, 1, 1], [], []>} : vector<8x256xbf16>, vector<256x128xbf16>, vector<8x128xf32> -> vector<8x128xf32>
    %c0_3 = arith.constant 0 : index
    %c0_4 = arith.constant 0 : index
    %4 = vector.load %arg3[%c0_3, %c0_4] : memref<1x128xf32, #tpu.memory_space<vmem>>, vector<1x128xf32>
    %5 = vector.broadcast %4 : vector<1x128xf32> to vector<8x128xf32>
    %6 = arith.addf %3, %5 : vector<8x128xf32>
    %cst_5 = arith.constant 0.000000e+00 : f32
    %7 = vector.broadcast %cst_5 : f32 to vector<8x128xf32>
    %8 = arith.maximumf %6, %7 : vector<8x128xf32>
    %9 = arith.truncf %8 : vector<8x128xf32> to vector<8x128xbf16>
    %c0_6 = arith.constant 0 : index
    %c0_7 = arith.constant 0 : index
    %10 = vector.load %arg4[%c0_6, %c0_7] : memref<128x128xbf16, #tpu.memory_space<vmem>>, vector<128x128xbf16>
    %cst_8 = arith.constant dense<0.000000e+00> : vector<8x128xf32>
    %11 = tpu.matmul %9, %10, %cst_8 {dimension_numbers = #tpu.dot_dimension_numbers<[1], [0], [0], [1], [0, 0, 1, 1], [], []>} : vector<8x128xbf16>, vector<128x128xbf16>, vector<8x128xf32> -> vector<8x128xf32>
    %c0_9 = arith.constant 0 : index
    %c0_10 = arith.constant 0 : index
    %12 = vector.load %arg5[%c0_9, %c0_10] : memref<1x128xf32, #tpu.memory_space<vmem>>, vector<1x128xf32>
    %13 = vector.broadcast %12 : vector<1x128xf32> to vector<8x128xf32>
    %14 = arith.addf %11, %13 : vector<8x128xf32>
    %cst_11 = arith.constant dense<0xFF800000> : vector<8xf32>
    %15 = vector.multi_reduction <maximumf>, %14, %cst_11 [1] : vector<8x128xf32> to vector<8xf32>
    %16 = vector.shape_cast %15 : vector<8xf32> to vector<8x1xf32>
    %17 = vector.broadcast %16 : vector<8x1xf32> to vector<8x128xf32>
    %18 = arith.subf %14, %17 : vector<8x128xf32>
    %19 = math.exp %18 : vector<8x128xf32>
    %cst_12 = arith.constant dense<0.000000e+00> : vector<8xf32>
    %20 = vector.multi_reduction <add>, %19, %cst_12 [1] : vector<8x128xf32> to vector<8xf32>
    %21 = vector.shape_cast %20 : vector<8xf32> to vector<8x1xf32>
    %22 = tpu.reciprocal %21 {approx = true} : vector<8x1xf32> -> vector<8x1xf32>
    %23 = vector.broadcast %22 : vector<8x1xf32> to vector<8x128xf32>
    %24 = arith.mulf %19, %23 : vector<8x128xf32>
    %c0_13 = arith.constant 0 : index
    %c0_14 = arith.constant 0 : index
    %25 = vector.load %arg6[%c0_13, %c0_14] : memref<8x128xf32, #tpu.memory_space<vmem>>, vector<8x128xf32>
    tpu.vector_store %arg6[%c0_13, %c0_14], %24 {strides = array<i32>} : memref<8x128xf32, #tpu.memory_space<vmem>>, vector<8x128xf32>,
    return
  }
  func.func @transform_0(%arg0: i32) -> (i32, i32) {
    %c0_i32 = arith.constant 0 : i32
    %c0_i32_0 = arith.constant 0 : i32
    return %arg0, %c0_i32 : i32, i32
  }
  func.func @transform_1(%arg0: i32) -> (i32, i32) {
    %c0_i32 = arith.constant 0 : i32
    %c0_i32_0 = arith.constant 0 : i32
    %c0_i32_1 = arith.constant 0 : i32
    return %c0_i32, %c0_i32_0 : i32, i32
  }
  func.func @transform_2(%arg0: i32) -> (i32, i32) {
    %c0_i32 = arith.constant 0 : i32
    %c0_i32_0 = arith.constant 0 : i32
    %c0_i32_1 = arith.constant 0 : i32
    return %c0_i32, %c0_i32_0 : i32, i32
  }
  func.func @transform_3(%arg0: i32) -> (i32, i32) {
    %c0_i32 = arith.constant 0 : i32
    %c0_i32_0 = arith.constant 0 : i32
    %c0_i32_1 = arith.constant 0 : i32
    return %c0_i32, %c0_i32_0 : i32, i32
  }
  func.func @transform_4(%arg0: i32) -> (i32, i32) {
    %c0_i32 = arith.constant 0 : i32
    %c0_i32_0 = arith.constant 0 : i32
    %c0_i32_1 = arith.constant 0 : i32
    return %c0_i32, %c0_i32_0 : i32, i32
  }
  func.func @transform_5(%arg0: i32) -> (i32, i32) {
    %c0_i32 = arith.constant 0 : i32
    %c0_i32_0 = arith.constant 0 : i32
    return %arg0, %c0_i32 : i32, i32
  }
}

</mosaic_0001>

<llo_original>
// kernel: tpu_custom_call.1
$region0: #{tpu_custom_call.1}
  #allocation0 [shape = 'u32[]', space=smem, size = 0x4, offset = 0x4, fixed_abs, tag = 'smem constant byte address 0x4 - core index']
  #allocation1 [shape = 'u32[72,128]{1,0:T(1,128)}', space=vmem, size = 0x9000, scoped, tag = 'internal scratch']
  %s0 = inlined_call_operand.hbm [shape: f32[10,256], index: 0, kind: input, shape index: {}]
  %s1 = inlined_call_operand.hbm [shape: bf16[256,128], index: 1, kind: input, shape index: {}]
  %s2 = inlined_call_operand.vmem [shape: f32[1,128], index: 2, kind: input, shape index: {}]
  %s3 = inlined_call_operand.hbm [shape: bf16[128,128], index: 3, kind: input, shape index: {}]
  %s4 = inlined_call_operand.vmem [shape: f32[1,128], index: 4, kind: input, shape index: {}]
  %s5 = inlined_call_operand.hbm [shape: f32[10,128], index: 5, kind: output, shape index: {}]
  %s6 = sld [smem:[#allocation0]]
  $region65: #{tpu_custom_call.1} parent=0
    _
  %s8 = ssub.s32 1, %s6
  %s9 = scalar_select 0, %s8, %s6
  $region1: #{tpu_custom_call.1} parent=0
    #allocation2 [shape = 'u8[16384]{0}', space=vmem, size = 0x4000, scoped, tag = 'input window, operand 0']
    #allocation3 [shape = 's32[2]{0}', space=sflag, size = 0x8, scoped, tag = 'scoped memory for tpu_custom_call.1']
    #allocation4 [shape = 's32[2]{0}', space=sflag, size = 0x8, scoped, tag = 'scoped memory for tpu_custom_call.1']
    #allocation5 [shape = 'u8[65536]{0}', space=vmem, size = 0x10000, scoped, tag = 'input window, operand 1, single buffered']
    #allocation6 [shape = 's32[1]{0}', space=sflag, size = 0x4, scoped, tag = 'scoped memory for tpu_custom_call.1']
    #allocation7 [shape = 'u8[32768]{0}', space=vmem, size = 0x8000, scoped, tag = 'input window, operand 3, single buffered']
    #allocation8 [shape = 'u8[8192]{0}', space=vmem, size = 0x2000, scoped, tag = 'output window, operand 0']
    %10 = vsyncpa [#allocation3], 0
    %s11 = scalar_lea.sflag [#allocation3], 1
    %12 = vsyncpa %s11, 0
    %13 = vsyncpa [#allocation6], 0
    %14 = vsyncpa [#allocation4], 0
    %s15 = scalar_lea.sflag [#allocation4], 1
    %16 = vsyncpa %s15, 0
    loop: start=0, step=1, limit=4
    $region2: #{tpu_custom_call.1} parent=1 // loop_pre_header
      _
    $region3: #{tpu_custom_call.1} parent=1 // loop_header
      %s18 = sphi 0, %s22
      %p19 = scmp.ge.s32.totalorder %s18, 4
      %s28 = sphi 0, %s30
      %s31 = sphi 0, %s28
      %s32 = sphi 0, %s31
      %s48 = sphi 0, %s32
      %s52 = sphi 0, %s52
      %s54 = sphi 0, %s52
      %s55 = sphi 0, %s54
      %s69 = sphi 0, %s55
      %s73 = sphi 0, %s73
      %s75 = sphi 0, %s73
      %s76 = sphi 0, %s75
      %s90 = sphi 0, %s76
      %s94 = sphi 0, %s94
      %s96 = sphi 0, %s94
      %s97 = sphi 0, %s96
      %s111 = sphi 0, %s97
      %s115 = sphi 0, %s115
      %s117 = sphi 0, %s115
      %s118 = sphi 0, %s117
      %s132 = sphi 0, %s118
      %s138 = sphi 0, %s140
      %s141 = sphi 0, %s138
      %s142 = sphi 0, %s141
      %s158 = sphi 0, %s142
    $region4: #{tpu_custom_call.1} parent=1 // loop_header_branch
      %21 = sbr.rel (%p19) target = $region8
    $region5: #{tpu_custom_call.1} parent=1 // loop_body
      %s23 = ssub.s32 %s18, 1
      %s24 = ssub.s32 %s18, 2
      %s25 = sadd.s32 %s18, 1
      %s26 = ssub.s32 %s18, %s25
      %p27 = scmp.eq.s32.totalorder %s26, 0
      %s29 = sadd.s32 %s28, 1
      %s30 = scalar_select %p27, %s28, %s29
      %p33 = pneg %p27
      %p34 = scmp.eq.s32.totalorder %s18, 1
      %p35 = por %p33, %p34
      %p36 = scmp.ne.s32.totalorder %s28, %s31
      %p37 = scmp.eq.s32.totalorder %s18, 0
      %p38 = por %p36, %p37
      %p39 = scmp.ne.s32.totalorder %s28, %s31
      %p40 = scmp.eq.s32.totalorder %s23, 1
      %p41 = por %p39, %p40
      %p42 = scmp.ne.s32.totalorder %s31, %s32
      %p43 = scmp.eq.s32.totalorder %s23, 0
      %p44 = por %p42, %p43
      %p45 = scmp.ne.s32.totalorder %s31, %s32
      %p46 = scmp.eq.s32.totalorder %s24, 1
      %p47 = por %p45, %p46
      %p49 = scmp.ne.s32.totalorder %s32, %s48
      %p50 = scmp.eq.s32.totalorder %s24, 0
      %p51 = por %p49, %p50
      %s53 = sadd.s32 %s52, 1
      %p56 = scmp.eq.s32.totalorder %s18, 1
      %p57 = scmp.ne.s32.totalorder %s52, %s54
      %p58 = scmp.eq.s32.totalorder %s18, 0
      %p59 = por %p57, %p58
      %p60 = scmp.ne.s32.totalorder %s52, %s54
      %p61 = scmp.eq.s32.totalorder %s23, 1
      %p62 = por %p60, %p61
      %p63 = scmp.ne.s32.totalorder %s54, %s55
      %p64 = scmp.eq.s32.totalorder %s23, 0
      %p65 = por %p63, %p64
      %p66 = scmp.ne.s32.totalorder %s54, %s55
      %p67 = scmp.eq.s32.totalorder %s24, 1
      %p68 = por %p66, %p67
      %p70 = scmp.ne.s32.totalorder %s55, %s69
      %p71 = scmp.eq.s32.totalorder %s24, 0
      %p72 = por %p70, %p71
      %s74 = sadd.s32 %s73, 1
      %p77 = scmp.eq.s32.totalorder %s18, 1
      %p78 = scmp.ne.s32.totalorder %s73, %s75
      %p79 = scmp.eq.s32.totalorder %s18, 0
      %p80 = por %p78, %p79
      %p81 = scmp.ne.s32.totalorder %s73, %s75
      %p82 = scmp.eq.s32.totalorder %s23, 1
      %p83 = por %p81, %p82
      %p84 = scmp.ne.s32.totalorder %s75, %s76
      %p85 = scmp.eq.s32.totalorder %s23, 0
      %p86 = por %p84, %p85
      %p87 = scmp.ne.s32.totalorder %s75, %s76
      %p88 = scmp.eq.s32.totalorder %s24, 1
      %p89 = por %p87, %p88
      %p91 = scmp.ne.s32.totalorder %s76, %s90
      %p92 = scmp.eq.s32.totalorder %s24, 0
      %p93 = por %p91, %p92
      %s95 = sadd.s32 %s94, 1
      %p98 = scmp.eq.s32.totalorder %s18, 1
      %p99 = scmp.ne.s32.totalorder %s94, %s96
      %p100 = scmp.eq.s32.totalorder %s18, 0
      %p101 = por %p99, %p100
      %p102 = scmp.ne.s32.totalorder %s94, %s96
      %p103 = scmp.eq.s32.totalorder %s23, 1
      %p104 = por %p102, %p103
      %p105 = scmp.ne.s32.totalorder %s96, %s97
      %p106 = scmp.eq.s32.totalorder %s23, 0
      %p107 = por %p105, %p106
      %p108 = scmp.ne.s32.totalorder %s96, %s97
      %p109 = scmp.eq.s32.totalorder %s24, 1
      %p110 = por %p108, %p109
      %p112 = scmp.ne.s32.totalorder %s97, %s111
      %p113 = scmp.eq.s32.totalorder %s24, 0
      %p114 = por %p112, %p113
      %s116 = sadd.s32 %s115, 1
      %p119 = scmp.eq.s32.totalorder %s18, 1
      %p120 = scmp.ne.s32.totalorder %s115, %s117
      %p121 = scmp.eq.s32.totalorder %s18, 0
      %p122 = por %p120, %p121
      %p123 = scmp.ne.s32.totalorder %s115, %s117
      %p124 = scmp.eq.s32.totalorder %s23, 1
      %p125 = por %p123, %p124
      %p126 = scmp.ne.s32.totalorder %s117, %s118
      %p127 = scmp.eq.s32.totalorder %s23, 0
      %p128 = por %p126, %p127
      %p129 = scmp.ne.s32.totalorder %s117, %s118
      %p130 = scmp.eq.s32.totalorder %s24, 1
      %p131 = por %p129, %p130
      %p133 = scmp.ne.s32.totalorder %s118, %s132
      %p134 = scmp.eq.s32.totalorder %s24, 0
      %p135 = por %p133, %p134
      %s136 = ssub.s32 %s18, %s25
      %p137 = scmp.eq.s32.totalorder %s136, 0
      %s139 = sadd.s32 %s138, 1
      %s140 = scalar_select %p137, %s138, %s139
      %p143 = pneg %p137
      %p144 = scmp.eq.s32.totalorder %s18, 1
      %p145 = por %p143, %p144
      %p146 = scmp.ne.s32.totalorder %s138, %s141
      %p147 = scmp.eq.s32.totalorder %s18, 0
      %p148 = por %p146, %p147
      %p149 = scmp.ne.s32.totalorder %s138, %s141
      %p150 = scmp.eq.s32.totalorder %s23, 1
      %p151 = por %p149, %p150
      %p152 = scmp.ne.s32.totalorder %s141, %s142
      %p153 = scmp.eq.s32.totalorder %s23, 0
      %p154 = por %p152, %p153
      %p155 = scmp.ne.s32.totalorder %s141, %s142
      %p156 = scmp.eq.s32.totalorder %s24, 1
      %p157 = por %p155, %p156
      %p159 = scmp.ne.s32.totalorder %s142, %s158
      %p160 = scmp.eq.s32.totalorder %s24, 0
      %p161 = por %p159, %p160
      %p162 = scmp.le.s32.totalorder 1, %s18
      %p163 = scmp.lt.s32.totalorder %s18, 3
      %p164 = pnand %p162, %p163
      %p165 = pneg %p164
      // Predicated region
      $region9: #{tpu_custom_call.1} parent=5 // pred_check
        _
      $region10: #{tpu_custom_call.1} parent=5 // pred_check_branch
        %167 = sbr.rel (%p164) target = $region12
      $region11: #{tpu_custom_call.1} parent=5 // pred_region
        %s168 = ssub.s32 %s18, 1
        // Predicated region
        $region13: #{tpu_custom_call.1} parent=11 // pred_check
          %p169 = pneg %p65
        $region14: #{tpu_custom_call.1} parent=11 // pred_check_branch
          %171 = sbr.rel (%p169) target = $region16
        $region15: #{tpu_custom_call.1} parent=11 // pred_region
          %173 = vsyncadd [#allocation6], 0
          %s174 = sshll.u32 %s1, 4
          %s175 = int_to_ptr.hbm [resolvable:$true] %s174
          %s176 = sshll.u32 [#allocation5], 4
          %s177 = int_to_ptr.vmem [resolvable:$true] %s176
          %182 = dma.hbm_to_vmem [thread:$0]  %s175, 2048, %s177, [#allocation6], 64, 64, 4
        $region16: #{tpu_custom_call.1} parent=11 // pred_fallthru
          _
        // Predicated region
        $region17: #{tpu_custom_call.1} parent=11 // pred_check
          %p183 = pneg %p86
        $region18: #{tpu_custom_call.1} parent=11 // pred_check_branch
          %185 = sbr.rel (%p183) target = $region20
        $region19: #{tpu_custom_call.1} parent=11 // pred_region
          _
        $region20: #{tpu_custom_call.1} parent=11 // pred_fallthru
          _
        // Predicated region
        $region21: #{tpu_custom_call.1} parent=11 // pred_check
          %p186 = pneg %p107
        $region22: #{tpu_custom_call.1} parent=11 // pred_check_branch
          %188 = sbr.rel (%p186) target = $region24
        $region23: #{tpu_custom_call.1} parent=11 // pred_region
          %190 = vsyncadd [#allocation6], 0
          %s191 = sshll.u32 %s3, 4
          %s192 = int_to_ptr.hbm [resolvable:$true] %s191
          %s193 = sshll.u32 [#allocation7], 4
          %s194 = int_to_ptr.vmem [resolvable:$true] %s193
          %199 = dma.hbm_to_vmem [thread:$0]  %s192, 1024, %s194, [#allocation6], 64, 64, 4
        $region24: #{tpu_custom_call.1} parent=11 // pred_fallthru
          _
        // Predicated region
        $region25: #{tpu_custom_call.1} parent=11 // pred_check
          %p200 = pneg %p128
        $region26: #{tpu_custom_call.1} parent=11 // pred_check_branch
          %202 = sbr.rel (%p200) target = $region28
        $region27: #{tpu_custom_call.1} parent=11 // pred_region
          _
        $region28: #{tpu_custom_call.1} parent=11 // pred_fallthru
          _
      $region12: #{tpu_custom_call.1} parent=5 // pred_fallthru
        _
      %p203 = scmp.lt.s32.totalorder %s18, 2
      // Predicated region
      $region29: #{tpu_custom_call.1} parent=5 // pred_check
        %p204 = pneg %p203
      $region30: #{tpu_custom_call.1} parent=5 // pred_check_branch
        %206 = sbr.rel (%p204) target = $region32
      $region31: #{tpu_custom_call.1} parent=5 // pred_region
        // Predicated region
        $region33: #{tpu_custom_call.1} parent=31 // pred_check
          %p207 = pneg %p38
        $region34: #{tpu_custom_call.1} parent=31 // pred_check_branch
          %209 = sbr.rel (%p207) target = $region36
        $region35: #{tpu_custom_call.1} parent=31 // pred_region
          %s210 = sand.u32 %s28, 1
          %s211 = scalar_lea.sflag [#allocation3], %s210
          %s212 = sand.u32 %s28, 1
          %s213 = smul.addr %s212, 16
          %s214 = scalar_lea.vmem [#allocation2], %s213
          %216 = vsyncadd %s211, 0
          %s217 = smul.addr %s18, 2
          %s218 = smul.addr %s217, 8
          %s219 = scalar_lea.hbm %s0, %s218
          %s221 = sshll.u32 %s219, 4
          %s222 = int_to_ptr.hbm [resolvable:$true] %s221
          %s223 = sshll.u32 %s214, 4
          %s224 = int_to_ptr.vmem [resolvable:$true] %s223
          %226 = dma.hbm_to_vmem [thread:$0]  %s222, 256, %s224, %s211
        $region36: #{tpu_custom_call.1} parent=31 // pred_fallthru
          _
      $region32: #{tpu_custom_call.1} parent=5 // pred_fallthru
        _
      %p227 = scmp.le.s32.totalorder 1, %s18
      %p228 = scmp.lt.s32.totalorder %s18, 3
      %p229 = pnand %p227, %p228
      %p230 = pneg %p229
      // Predicated region
      $region37: #{tpu_custom_call.1} parent=5 // pred_check
        _
      $region38: #{tpu_custom_call.1} parent=5 // pred_check_branch
        %232 = sbr.rel (%p229) target = $region40
      $region39: #{tpu_custom_call.1} parent=5 // pred_region
        %s233 = ssub.s32 %s18, 1
        %s234 = sand.u32 %s31, 1
        %s235 = scalar_lea.sflag [#allocation3], %s234
        %s236 = sand.u32 %s31, 1
        %s237 = smul.addr %s236, 16
        %s238 = scalar_lea.vmem [#allocation2], %s237
        // Predicated region
        $region41: #{tpu_custom_call.1} parent=39 // pred_check
          %p239 = pneg %p44
        $region42: #{tpu_custom_call.1} parent=39 // pred_check_branch
          %241 = sbr.rel (%p239) target = $region44
        $region43: #{tpu_custom_call.1} parent=39 // pred_region
          %243 = dma.done %s235, 256
        $region44: #{tpu_custom_call.1} parent=39 // pred_fallthru
          _
        // Predicated region
        $region45: #{tpu_custom_call.1} parent=39 // pred_check
          %p244 = pneg %p65
        $region46: #{tpu_custom_call.1} parent=39 // pred_check_branch
          %246 = sbr.rel (%p244) target = $region48
        $region47: #{tpu_custom_call.1} parent=39 // pred_region
          %248 = dma.done [#allocation6], 2048
        $region48: #{tpu_custom_call.1} parent=39 // pred_fallthru
          _
        // Predicated region
        $region49: #{tpu_custom_call.1} parent=39 // pred_check
          %p249 = pneg %p107
        $region50: #{tpu_custom_call.1} parent=39 // pred_check_branch
          %251 = sbr.rel (%p249) target = $region52
        $region51: #{tpu_custom_call.1} parent=39 // pred_region
          %253 = dma.done [#allocation6], 1024
        $region52: #{tpu_custom_call.1} parent=39 // pred_fallthru
          _
        %s254 = sand.u32 %s31, 1
        %s255 = scalar_lea.sflag [#allocation3], %s254
        %s256 = sand.u32 %s31, 1
        %s257 = smul.addr %s256, 16
        %s258 = scalar_lea.vmem [#allocation2], %s257
        %p259 = pneg %p44
        %p260 = pneg %p41
        %p261 = pneg %p65
        %p262 = pneg %p62
        %p263 = pneg %p86
        %p264 = pneg %p83
        %p265 = pneg %p107
        %p266 = pneg %p104
        %p267 = pneg %p128
        %p268 = pneg %p125
        %p269 = pneg %p154
        %p270 = pneg %p151
        %s271 = sand.u32 %s141, 1
        %s272 = scalar_lea.sflag [#allocation4], %s271
        %s273 = sand.u32 %s141, 1
        %s274 = smul.addr %s273, 8
        %s275 = scalar_lea.vmem [#allocation8], %s274
        %v276 = vld [vmem:[%s238] sm:$0xff]
        %v277 = vld [vmem:[%s238 + $0x8] sm:$0xff]
        %v278 = vpack.c.bf16 %v276, %v276
        %v279 = vpack.c.bf16 %v277, %v277
        %v280 = vld [vmem:[#allocation5] sm:$0xf]
        %v281 = vld [vmem:[#allocation5 + $0x4] sm:$0xf]
        %v282 = vld [vmem:[#allocation5 + $0x8] sm:$0xf]
        %v283 = vld [vmem:[#allocation5 + $0xc] sm:$0xf]
        %v284 = vld [vmem:[#allocation5 + $0x10] sm:$0xf]
        %v285 = vld [vmem:[#allocation5 + $0x14] sm:$0xf]
        %v286 = vld [vmem:[#allocation5 + $0x18] sm:$0xf]
        %v287 = vld [vmem:[#allocation5 + $0x1c] sm:$0xf]
        %v288 = vld [vmem:[#allocation5 + $0x20] sm:$0xf]
        %v289 = vld [vmem:[#allocation5 + $0x24] sm:$0xf]
        %v290 = vld [vmem:[#allocation5 + $0x28] sm:$0xf]
        %v291 = vld [vmem:[#allocation5 + $0x2c] sm:$0xf]
        %v292 = vld [vmem:[#allocation5 + $0x30] sm:$0xf]
        %v293 = vld [vmem:[#allocation5 + $0x34] sm:$0xf]
        %v294 = vld [vmem:[#allocation5 + $0x38] sm:$0xf]
        %v295 = vld [vmem:[#allocation5 + $0x3c] sm:$0xf]
        %v296 = vld [vmem:[#allocation5 + $0x40] sm:$0xf]
        %v297 = vld [vmem:[#allocation5 + $0x44] sm:$0xf]
        %v298 = vld [vmem:[#allocation5 + $0x48] sm:$0xf]
        %v299 = vld [vmem:[#allocation5 + $0x4c] sm:$0xf]
        %v300 = vld [vmem:[#allocation5 + $0x50] sm:$0xf]
        %v301 = vld [vmem:[#allocation5 + $0x54] sm:$0xf]
        %v302 = vld [vmem:[#allocation5 + $0x58] sm:$0xf]
        %v303 = vld [vmem:[#allocation5 + $0x5c] sm:$0xf]
        %v304 = vld [vmem:[#allocation5 + $0x60] sm:$0xf]
        %v305 = vld [vmem:[#allocation5 + $0x64] sm:$0xf]
        %v306 = vld [vmem:[#allocation5 + $0x68] sm:$0xf]
        %v307 = vld [vmem:[#allocation5 + $0x6c] sm:$0xf]
        %v308 = vld [vmem:[#allocation5 + $0x70] sm:$0xf]
        %v309 = vld [vmem:[#allocation5 + $0x74] sm:$0xf]
        %v310 = vld [vmem:[#allocation5 + $0x78] sm:$0xf]
        %v311 = vld [vmem:[#allocation5 + $0x7c] sm:$0xf]
        %v312 = vld [vmem:[%s2] sm:$0x1]
        %v314 = vperm.slane %v312, 0
        %v348 = vunpack.c.l.b16 %v280
        %v349 = vunpack.c.l.b16 %v281
        %v350 = vunpack.c.l.b16 %v282
        %v351 = vunpack.c.l.b16 %v283
        %v352 = vunpack.c.l.b16 %v284
        %v353 = vunpack.c.l.b16 %v285
        %v354 = vunpack.c.l.b16 %v286
        %v355 = vunpack.c.l.b16 %v287
        %v356 = vunpack.c.l.b16 %v288
        %v357 = vunpack.c.l.b16 %v289
        %v358 = vunpack.c.l.b16 %v290
        %v359 = vunpack.c.l.b16 %v291
        %v360 = vunpack.c.l.b16 %v292
        %v361 = vunpack.c.l.b16 %v293
        %v362 = vunpack.c.l.b16 %v294
        %v363 = vunpack.c.l.b16 %v295
        %v364 = vunpack.c.l.b16 %v296
        %v365 = vunpack.c.l.b16 %v297
        %v366 = vunpack.c.l.b16 %v298
        %v367 = vunpack.c.l.b16 %v299
        %v368 = vunpack.c.l.b16 %v300
        %v369 = vunpack.c.l.b16 %v301
        %v370 = vunpack.c.l.b16 %v302
        %v371 = vunpack.c.l.b16 %v303
        %v372 = vunpack.c.l.b16 %v304
        %v373 = vunpack.c.l.b16 %v305
        %v374 = vunpack.c.l.b16 %v306
        %v375 = vunpack.c.l.b16 %v307
        %v376 = vunpack.c.l.b16 %v308
        %v377 = vunpack.c.l.b16 %v309
        %v378 = vunpack.c.l.b16 %v310
        %v379 = vunpack.c.l.b16 %v311
        %v380 = vpack.c.b16 %v349, %v348
        %v381 = vpack.c.b16 %v351, %v350
        %v382 = vpack.c.b16 %v353, %v352
        %v383 = vpack.c.b16 %v355, %v354
        %v384 = vpack.c.b16 %v357, %v356
        %v385 = vpack.c.b16 %v359, %v358
        %v386 = vpack.c.b16 %v361, %v360
        %v387 = vpack.c.b16 %v363, %v362
        %v388 = vpack.c.b16 %v365, %v364
        %v389 = vpack.c.b16 %v367, %v366
        %v390 = vpack.c.b16 %v369, %v368
        %v391 = vpack.c.b16 %v371, %v370
        %v392 = vpack.c.b16 %v373, %v372
        %v393 = vpack.c.b16 %v375, %v374
        %v394 = vpack.c.b16 %v377, %v376
        %v395 = vpack.c.b16 %v379, %v378
        %412 = vmatpush.bf16.msra.mxu0 %v387
        %413 = vmatpush.bf16.msra.mxu0 %v386
        %414 = vmatpush.bf16.msra.mxu0 %v385
        %415 = vmatpush.bf16.msra.mxu0 %v384
        %416 = vmatpush.bf16.msra.mxu0 %v383
        %417 = vmatpush.bf16.msra.mxu0 %v382
        %418 = vmatpush.bf16.msra.mxu0 %v381
        %419 = vmatpush.bf16.msra.mxu0 %v380
        %420 = vmatmul.bf16.gmra.mxu0 %v278
        %v421 = vpop.f32.mrf.mxu0
        %v422 = vadd.f32 %v314, %v421
        %v423 = vpop.f32.mrf.mxu0
        %424 = vdwg.mxu0
        %425 = vmatpush.bf16.msra.mxu0 %v395
        %426 = vmatpush.bf16.msra.mxu0 %v394
        %427 = vmatpush.bf16.msra.mxu0 %v393
        %428 = vmatpush.bf16.msra.mxu0 %v392
        %429 = vmatpush.bf16.msra.mxu0 %v391
        %430 = vmatpush.bf16.msra.mxu0 %v390
        %431 = vmatpush.bf16.msra.mxu0 %v389
        %432 = vmatpush.bf16.msra.mxu0 %v388
        %433 = vmatmul.bf16.gmra.mxu0 %v279
        %v434 = vpop.f32.mrf.mxu0
        %v435 = vadd.f32 %v422, %v434
        %v436 = vpop.f32.mrf.mxu0
        %437 = vdwg.mxu0
        %v438 = vmax.f32 %v435, 0.0
        %v439 = vpack.c.bf16 %v438, %v438
        %v440 = vld [vmem:[#allocation7] sm:$0xf]
        %v441 = vld [vmem:[#allocation7 + $0x4] sm:$0xf]
        %v442 = vld [vmem:[#allocation7 + $0x8] sm:$0xf]
        %v443 = vld [vmem:[#allocation7 + $0xc] sm:$0xf]
        %v444 = vld [vmem:[#allocation7 + $0x10] sm:$0xf]
        %v445 = vld [vmem:[#allocation7 + $0x14] sm:$0xf]
        %v446 = vld [vmem:[#allocation7 + $0x18] sm:$0xf]
        %v447 = vld [vmem:[#allocation7 + $0x1c] sm:$0xf]
        %v448 = vld [vmem:[#allocation7 + $0x20] sm:$0xf]
        %v449 = vld [vmem:[#allocation7 + $0x24] sm:$0xf]
        %v450 = vld [vmem:[#allocation7 + $0x28] sm:$0xf]
        %v451 = vld [vmem:[#allocation7 + $0x2c] sm:$0xf]
        %v452 = vld [vmem:[#allocation7 + $0x30] sm:$0xf]
        %v453 = vld [vmem:[#allocation7 + $0x34] sm:$0xf]
        %v454 = vld [vmem:[#allocation7 + $0x38] sm:$0xf]
        %v455 = vld [vmem:[#allocation7 + $0x3c] sm:$0xf]
        %v456 = vld [vmem:[%s4] sm:$0x1]
        %v458 = vperm.slane %v456, 0
        %v476 = vunpack.c.l.b16 %v440
        %v477 = vunpack.c.l.b16 %v441
        %v478 = vunpack.c.l.b16 %v442
        %v479 = vunpack.c.l.b16 %v443
        %v480 = vunpack.c.l.b16 %v444
        %v481 = vunpack.c.l.b16 %v445
        %v482 = vunpack.c.l.b16 %v446
        %v483 = vunpack.c.l.b16 %v447
        %v484 = vunpack.c.l.b16 %v448
        %v485 = vunpack.c.l.b16 %v449
        %v486 = vunpack.c.l.b16 %v450
        %v487 = vunpack.c.l.b16 %v451
        %v488 = vunpack.c.l.b16 %v452
        %v489 = vunpack.c.l.b16 %v453
        %v490 = vunpack.c.l.b16 %v454
        %v491 = vunpack.c.l.b16 %v455
        %v492 = vpack.c.b16 %v477, %v476
        %v493 = vpack.c.b16 %v479, %v478
        %v494 = vpack.c.b16 %v481, %v480
        %v495 = vpack.c.b16 %v483, %v482
        %v496 = vpack.c.b16 %v485, %v484
        %v497 = vpack.c.b16 %v487, %v486
        %v498 = vpack.c.b16 %v489, %v488
        %v499 = vpack.c.b16 %v491, %v490
        %508 = vmatpush.bf16.msra.mxu0 %v499
        %509 = vmatpush.bf16.msra.mxu0 %v498
        %510 = vmatpush.bf16.msra.mxu0 %v497
        %511 = vmatpush.bf16.msra.mxu0 %v496
        %512 = vmatpush.bf16.msra.mxu0 %v495
        %513 = vmatpush.bf16.msra.mxu0 %v494
        %514 = vmatpush.bf16.msra.mxu0 %v493
        %515 = vmatpush.bf16.msra.mxu0 %v492
        %516 = vmatmul.bf16.gmra.mxu0 %v439
        %v517 = vpop.f32.mrf.mxu0
        %v518 = vadd.f32 %v458, %v517
        %v519 = vpop.f32.mrf.mxu0
        %520 = vdwg.mxu0
        %521 = vmax.xlane.f32.xlu0 %v518
        %v522 = vpop.xlane.xlu0 %521
        %v523 = vsub.f32 %v518, %v522
        %v524 = vmul.f32 %v523, 1.442695
        %v525 = vpow.pop %v524
        %526 = vadd.xlane.f32.xlu0 %v525
        %v527 = vpop.xlane.xlu0 %526
        %v528 = vrcp.pop %v527
        %v529 = vmul.f32 %v525, %v528
        %530 = vst [vmem:[%s275] sm:$0xff] %v529
        %s531 = sand.u32 %s141, 1
        %s532 = scalar_lea.sflag [#allocation4], %s531
        %s533 = sand.u32 %s141, 1
        %s534 = smul.addr %s533, 8
        %s535 = scalar_lea.vmem [#allocation8], %s534
        // Predicated region
        $region53: #{tpu_custom_call.1} parent=39 // pred_check
          %p536 = pneg %p151
        $region54: #{tpu_custom_call.1} parent=39 // pred_check_branch
          %538 = sbr.rel (%p536) target = $region56
        $region55: #{tpu_custom_call.1} parent=39 // pred_region
          %540 = vsyncadd %s532, 0
          %s541 = smul.addr %s23, 8
          %s542 = scalar_lea.hbm %s5, %s541
          %s544 = sshll.u32 %s535, 4
          %s545 = int_to_ptr.vmem [resolvable:$true] %s544
          %s546 = sshll.u32 %s542, 4
          %s547 = int_to_ptr.hbm [resolvable:$true] %s546
          %549 = dma.vmem_to_hbm [thread:$0]  %s545, 128, %s547, %s532
        $region56: #{tpu_custom_call.1} parent=39 // pred_fallthru
          _
      $region40: #{tpu_custom_call.1} parent=5 // pred_fallthru
        _
      %p550 = scmp.le.s32.totalorder 2, %s18
      // Predicated region
      $region57: #{tpu_custom_call.1} parent=5 // pred_check
        %p551 = pneg %p550
      $region58: #{tpu_custom_call.1} parent=5 // pred_check_branch
        %553 = sbr.rel (%p551) target = $region60
      $region59: #{tpu_custom_call.1} parent=5 // pred_region
        %s554 = ssub.s32 %s18, 2
        // Predicated region
        $region61: #{tpu_custom_call.1} parent=59 // pred_check
          %p555 = pneg %p157
        $region62: #{tpu_custom_call.1} parent=59 // pred_check_branch
          %557 = sbr.rel (%p555) target = $region64
        $region63: #{tpu_custom_call.1} parent=59 // pred_region
          %s558 = sand.u32 %s142, 1
          %s559 = scalar_lea.sflag [#allocation4], %s558
          %s560 = sand.u32 %s142, 1
          %s561 = smul.addr %s560, 8
          %s562 = scalar_lea.vmem [#allocation8], %s561
          %564 = dma.done %s559, 128
        $region64: #{tpu_custom_call.1} parent=59 // pred_fallthru
          _
      $region60: #{tpu_custom_call.1} parent=5 // pred_fallthru
        _
    $region6: #{tpu_custom_call.1} parent=1 // loop_footer
      %s22 = sadd.s32 1, %s18
    $region7: #{tpu_custom_call.1} parent=1 // loop_footer_branch
      %17 = sbr.rel target = $region3
    $region8: #{tpu_custom_call.1} parent=1 // loop_exit
      _
    %565 = vsyncpa [#allocation3], 1
    %s566 = scalar_lea.sflag [#allocation3], 1
    %567 = vsyncpa %s566, 1
    %568 = vsyncpa [#allocation6], 1
    %569 = vsyncpa [#allocation4], 1
    %s570 = scalar_lea.sflag [#allocation4], 1
    %571 = vsyncpa %s570, 1

// kernel: tpu_custom_call.1
$region0: #{tpu_custom_call.1}
  #allocation0 [shape = 'u32[]', space=smem, size = 0x4, offset = 0x4, fixed_abs, tag = 'smem constant byte address 0x4 - core index']
  #allocation1 [shape = 'u32[72,128]{1,0:T(1,128)}', space=vmem, size = 0x9000, scoped, tag = 'internal scratch']
  %s0 = inlined_call_operand.hbm [shape: f32[10,256], index: 0, kind: input, shape index: {}]
  %s1 = inlined_call_operand.hbm [shape: bf16[256,128], index: 1, kind: input, shape index: {}]
  %s2 = inlined_call_operand.vmem [shape: f32[1,128], index: 2, kind: input, shape index: {}]
  %s3 = inlined_call_operand.hbm [shape: bf16[128,128], index: 3, kind: input, shape index: {}]
  %s4 = inlined_call_operand.vmem [shape: f32[1,128], index: 4, kind: input, shape index: {}]
  %s5 = inlined_call_operand.hbm [shape: f32[10,128], index: 5, kind: output, shape index: {}]
  %s6 = sld [smem:[#allocation0]]
  $region65: #{tpu_custom_call.1} parent=0
    _
  %s8 = ssub.s32 1, %s6
  %s9 = scalar_select 0, %s8, %s6
  $region1: #{tpu_custom_call.1} parent=0
    #allocation2 [shape = 'u8[16384]{0}', space=vmem, size = 0x4000, scoped, tag = 'input window, operand 0']
    #allocation3 [shape = 's32[2]{0}', space=sflag, size = 0x8, scoped, tag = 'scoped memory for tpu_custom_call.1']
    #allocation4 [shape = 's32[2]{0}', space=sflag, size = 0x8, scoped, tag = 'scoped memory for tpu_custom_call.1']
    #allocation5 [shape = 'u8[65536]{0}', space=vmem, size = 0x10000, scoped, tag = 'input window, operand 1, single buffered']
    #allocation6 [shape = 's32[1]{0}', space=sflag, size = 0x4, scoped, tag = 'scoped memory for tpu_custom_call.1']
    #allocation7 [shape = 'u8[32768]{0}', space=vmem, size = 0x8000, scoped, tag = 'input window, operand 3, single buffered']
    #allocation8 [shape = 'u8[8192]{0}', space=vmem, size = 0x2000, scoped, tag = 'output window, operand 0']
    %10 = vsyncpa [#allocation3], 0
    %s11 = scalar_lea.sflag [#allocation3], 1
    %12 = vsyncpa %s11, 0
    %13 = vsyncpa [#allocation6], 0
    %14 = vsyncpa [#allocation4], 0
    %s15 = scalar_lea.sflag [#allocation4], 1
    %16 = vsyncpa %s15, 0
    loop: start=0, step=1, limit=4
    $region2: #{tpu_custom_call.1} parent=1 // loop_pre_header
      _
    $region3: #{tpu_custom_call.1} parent=1 // loop_header
      %s18 = sphi 0, %s22
      %p19 = scmp.ge.s32.totalorder %s18, 4
      %s28 = sphi 0, %s30
      %s31 = sphi 0, %s28
      %s32 = sphi 0, %s31
      %s48 = sphi 0, %s32
      %s52 = sphi 0, %s52
      %s54 = sphi 0, %s52
      %s55 = sphi 0, %s54
      %s69 = sphi 0, %s55
      %s73 = sphi 0, %s73
      %s75 = sphi 0, %s73
      %s76 = sphi 0, %s75
      %s90 = sphi 0, %s76
      %s94 = sphi 0, %s94
      %s96 = sphi 0, %s94
      %s97 = sphi 0, %s96
      %s111 = sphi 0, %s97
      %s115 = sphi 0, %s115
      %s117 = sphi 0, %s115
      %s118 = sphi 0, %s117
      %s132 = sphi 0, %s118
      %s138 = sphi 0, %s140
      %s141 = sphi 0, %s138
      %s142 = sphi 0, %s141
      %s158 = sphi 0, %s142
    $region4: #{tpu_custom_call.1} parent=1 // loop_header_branch
      %21 = sbr.rel (%p19) target = $region8
    $region5: #{tpu_custom_call.1} parent=1 // loop_body
      %s23 = ssub.s32 %s18, 1
      %s24 = ssub.s32 %s18, 2
      %s25 = sadd.s32 %s18, 1
      %s26 = ssub.s32 %s18, %s25
      %p27 = scmp.eq.s32.totalorder %s26, 0
      %s29 = sadd.s32 %s28, 1
      %s30 = scalar_select %p27, %s28, %s29
      %p33 = pneg %p27
      %p34 = scmp.eq.s32.totalorder %s18, 1
      %p35 = por %p33, %p34
      %p36 = scmp.ne.s32.totalorder %s28, %s31
      %p37 = scmp.eq.s32.totalorder %s18, 0
      %p38 = por %p36, %p37
      %p39 = scmp.ne.s32.totalorder %s28, %s31
      %p40 = scmp.eq.s32.totalorder %s23, 1
      %p41 = por %p39, %p40
      %p42 = scmp.ne.s32.totalorder %s31, %s32
      %p43 = scmp.eq.s32.totalorder %s23, 0
      %p44 = por %p42, %p43
      %p45 = scmp.ne.s32.totalorder %s31, %s32
      %p46 = scmp.eq.s32.totalorder %s24, 1
      %p47 = por %p45, %p46
      %p49 = scmp.ne.s32.totalorder %s32, %s48
      %p50 = scmp.eq.s32.totalorder %s24, 0
      %p51 = por %p49, %p50
      %s53 = sadd.s32 %s52, 1
      %p56 = scmp.eq.s32.totalorder %s18, 1
      %p57 = scmp.ne.s32.totalorder %s52, %s54
      %p58 = scmp.eq.s32.totalorder %s18, 0
      %p59 = por %p57, %p58
      %p60 = scmp.ne.s32.totalorder %s52, %s54
      %p61 = scmp.eq.s32.totalorder %s23, 1
      %p62 = por %p60, %p61
      %p63 = scmp.ne.s32.totalorder %s54, %s55
      %p64 = scmp.eq.s32.totalorder %s23, 0
      %p65 = por %p63, %p64
      %p66 = scmp.ne.s32.totalorder %s54, %s55
      %p67 = scmp.eq.s32.totalorder %s24, 1
      %p68 = por %p66, %p67
      %p70 = scmp.ne.s32.totalorder %s55, %s69
      %p71 = scmp.eq.s32.totalorder %s24, 0
      %p72 = por %p70, %p71
      %s74 = sadd.s32 %s73, 1
      %p77 = scmp.eq.s32.totalorder %s18, 1
      %p78 = scmp.ne.s32.totalorder %s73, %s75
      %p79 = scmp.eq.s32.totalorder %s18, 0
      %p80 = por %p78, %p79
      %p81 = scmp.ne.s32.totalorder %s73, %s75
      %p82 = scmp.eq.s32.totalorder %s23, 1
      %p83 = por %p81, %p82
      %p84 = scmp.ne.s32.totalorder %s75, %s76
      %p85 = scmp.eq.s32.totalorder %s23, 0
      %p86 = por %p84, %p85
      %p87 = scmp.ne.s32.totalorder %s75, %s76
      %p88 = scmp.eq.s32.totalorder %s24, 1
      %p89 = por %p87, %p88
      %p91 = scmp.ne.s32.totalorder %s76, %s90
      %p92 = scmp.eq.s32.totalorder %s24, 0
      %p93 = por %p91, %p92
      %s95 = sadd.s32 %s94, 1
      %p98 = scmp.eq.s32.totalorder %s18, 1
      %p99 = scmp.ne.s32.totalorder %s94, %s96
      %p100 = scmp.eq.s32.totalorder %s18, 0
      %p101 = por %p99, %p100
      %p102 = scmp.ne.s32.totalorder %s94, %s96
      %p103 = scmp.eq.s32.totalorder %s23, 1
      %p104 = por %p102, %p103
      %p105 = scmp.ne.s32.totalorder %s96, %s97
      %p106 = scmp.eq.s32.totalorder %s23, 0
      %p107 = por %p105, %p106
      %p108 = scmp.ne.s32.totalorder %s96, %s97
      %p109 = scmp.eq.s32.totalorder %s24, 1
      %p110 = por %p108, %p109
      %p112 = scmp.ne.s32.totalorder %s97, %s111
      %p113 = scmp.eq.s32.totalorder %s24, 0
      %p114 = por %p112, %p113
      %s116 = sadd.s32 %s115, 1
      %p119 = scmp.eq.s32.totalorder %s18, 1
      %p120 = scmp.ne.s32.totalorder %s115, %s117
      %p121 = scmp.eq.s32.totalorder %s18, 0
      %p122 = por %p120, %p121
      %p123 = scmp.ne.s32.totalorder %s115, %s117
      %p124 = scmp.eq.s32.totalorder %s23, 1
      %p125 = por %p123, %p124
      %p126 = scmp.ne.s32.totalorder %s117, %s118
      %p127 = scmp.eq.s32.totalorder %s23, 0
      %p128 = por %p126, %p127
      %p129 = scmp.ne.s32.totalorder %s117, %s118
      %p130 = scmp.eq.s32.totalorder %s24, 1
      %p131 = por %p129, %p130
      %p133 = scmp.ne.s32.totalorder %s118, %s132
      %p134 = scmp.eq.s32.totalorder %s24, 0
      %p135 = por %p133, %p134
      %s136 = ssub.s32 %s18, %s25
      %p137 = scmp.eq.s32.totalorder %s136, 0
      %s139 = sadd.s32 %s138, 1
      %s140 = scalar_select %p137, %s138, %s139
      %p143 = pneg %p137
      %p144 = scmp.eq.s32.totalorder %s18, 1
      %p145 = por %p143, %p144
      %p146 = scmp.ne.s32.totalorder %s138, %s141
      %p147 = scmp.eq.s32.totalorder %s18, 0
      %p148 = por %p146, %p147
      %p149 = scmp.ne.s32.totalorder %s138, %s141
      %p150 = scmp.eq.s32.totalorder %s23, 1
      %p151 = por %p149, %p150
      %p152 = scmp.ne.s32.totalorder %s141, %s142
      %p153 = scmp.eq.s32.totalorder %s23, 0
      %p154 = por %p152, %p153
      %p155 = scmp.ne.s32.totalorder %s141, %s142
      %p156 = scmp.eq.s32.totalorder %s24, 1
      %p157 = por %p155, %p156
      %p159 = scmp.ne.s32.totalorder %s142, %s158
      %p160 = scmp.eq.s32.totalorder %s24, 0
      %p161 = por %p159, %p160
      %p162 = scmp.le.s32.totalorder 1, %s18
      %p163 = scmp.lt.s32.totalorder %s18, 3
      %p164 = pnand %p162, %p163
      %p165 = pneg %p164
      // Predicated region
      $region9: #{tpu_custom_call.1} parent=5 // pred_check
        _
      $region10: #{tpu_custom_call.1} parent=5 // pred_check_branch
        %167 = sbr.rel (%p164) target = $region12
      $region11: #{tpu_custom_call.1} parent=5 // pred_region
        %s168 = ssub.s32 %s18, 1
        // Predicated region
        $region13: #{tpu_custom_call.1} parent=11 // pred_check
          %p169 = pneg %p65
        $region14: #{tpu_custom_call.1} parent=11 // pred_check_branch
          %171 = sbr.rel (%p169) target = $region16
        $region15: #{tpu_custom_call.1} parent=11 // pred_region
          %173 = vsyncadd [#allocation6], 0
          %s174 = sshll.u32 %s1, 4
          %s175 = int_to_ptr.hbm [resolvable:$true] %s174
          %s176 = sshll.u32 [#allocation5], 4
          %s177 = int_to_ptr.vmem [resolvable:$true] %s176
          %182 = dma.hbm_to_vmem [thread:$0]  %s175, 2048, %s177, [#allocation6], 64, 64, 4
        $region16: #{tpu_custom_call.1} parent=11 // pred_fallthru
          _
        // Predicated region
        $region17: #{tpu_custom_call.1} parent=11 // pred_check
          %p183 = pneg %p86
        $region18: #{tpu_custom_call.1} parent=11 // pred_check_branch
          %185 = sbr.rel (%p183) target = $region20
        $region19: #{tpu_custom_call.1} parent=11 // pred_region
          _
        $region20: #{tpu_custom_call.1} parent=11 // pred_fallthru
          _
        // Predicated region
        $region21: #{tpu_custom_call.1} parent=11 // pred_check
          %p186 = pneg %p107
        $region22: #{tpu_custom_call.1} parent=11 // pred_check_branch
          %188 = sbr.rel (%p186) target = $region24
        $region23: #{tpu_custom_call.1} parent=11 // pred_region
          %190 = vsyncadd [#allocation6], 0
          %s191 = sshll.u32 %s3, 4
          %s192 = int_to_ptr.hbm [resolvable:$true] %s191
          %s193 = sshll.u32 [#allocation7], 4
          %s194 = int_to_ptr.vmem [resolvable:$true] %s193
          %199 = dma.hbm_to_vmem [thread:$0]  %s192, 1024, %s194, [#allocation6], 64, 64, 4
        $region24: #{tpu_custom_call.1} parent=11 // pred_fallthru
          _
        // Predicated region
        $region25: #{tpu_custom_call.1} parent=11 // pred_check
          %p200 = pneg %p128
        $region26: #{tpu_custom_call.1} parent=11 // pred_check_branch
          %202 = sbr.rel (%p200) target = $region28
        $region27: #{tpu_custom_call.1} parent=11 // pred_region
          _
        $region28: #{tpu_custom_call.1} parent=11 // pred_fallthru
          _
      $region12: #{tpu_custom_call.1} parent=5 // pred_fallthru
        _
      %p203 = scmp.lt.s32.totalorder %s18, 2
      // Predicated region
      $region29: #{tpu_custom_call.1} parent=5 // pred_check
        %p204 = pneg %p203
      $region30: #{tpu_custom_call.1} parent=5 // pred_check_branch
        %206 = sbr.rel (%p204) target = $region32
      $region31: #{tpu_custom_call.1} parent=5 // pred_region
        // Predicated region
        $region33: #{tpu_custom_call.1} parent=31 // pred_check
          %p207 = pneg %p38
        $region34: #{tpu_custom_call.1} parent=31 // pred_check_branch
          %209 = sbr.rel (%p207) target = $region36
        $region35: #{tpu_custom_call.1} parent=31 // pred_region
          %s210 = sand.u32 %s28, 1
          %s211 = scalar_lea.sflag [#allocation3], %s210
          %s212 = sand.u32 %s28, 1
          %s213 = smul.addr %s212, 16
          %s214 = scalar_lea.vmem [#allocation2], %s213
          %216 = vsyncadd %s211, 0
          %s217 = smul.addr %s18, 2
          %s218 = smul.addr %s217, 8
          %s219 = scalar_lea.hbm %s0, %s218
          %s221 = sshll.u32 %s219, 4
          %s222 = int_to_ptr.hbm [resolvable:$true] %s221
          %s223 = sshll.u32 %s214, 4
          %s224 = int_to_ptr.vmem [resolvable:$true] %s223
          %226 = dma.hbm_to_vmem [thread:$0]  %s222, 256, %s224, %s211
        $region36: #{tpu_custom_call.1} parent=31 // pred_fallthru
          _
      $region32: #{tpu_custom_call.1} parent=5 // pred_fallthru
        _
      %p227 = scmp.le.s32.totalorder 1, %s18
      %p228 = scmp.lt.s32.totalorder %s18, 3
      %p229 = pnand %p227, %p228
      %p230 = pneg %p229
      // Predicated region
      $region37: #{tpu_custom_call.1} parent=5 // pred_check
        _
      $region38: #{tpu_custom_call.1} parent=5 // pred_check_branch
        %232 = sbr.rel (%p229) target = $region40
      $region39: #{tpu_custom_call.1} parent=5 // pred_region
        %s233 = ssub.s32 %s18, 1
        %s234 = sand.u32 %s31, 1
        %s235 = scalar_lea.sflag [#allocation3], %s234
        %s236 = sand.u32 %s31, 1
        %s237 = smul.addr %s236, 16
        %s238 = scalar_lea.vmem [#allocation2], %s237
        // Predicated region
        $region41: #{tpu_custom_call.1} parent=39 // pred_check
          %p239 = pneg %p44
        $region42: #{tpu_custom_call.1} parent=39 // pred_check_branch
          %241 = sbr.rel (%p239) target = $region44
        $region43: #{tpu_custom_call.1} parent=39 // pred_region
          %243 = dma.done %s235, 256
        $region44: #{tpu_custom_call.1} parent=39 // pred_fallthru
          _
        // Predicated region
        $region45: #{tpu_custom_call.1} parent=39 // pred_check
          %p244 = pneg %p65
        $region46: #{tpu_custom_call.1} parent=39 // pred_check_branch
          %246 = sbr.rel (%p244) target = $region48
        $region47: #{tpu_custom_call.1} parent=39 // pred_region
          %248 = dma.done [#allocation6], 2048
        $region48: #{tpu_custom_call.1} parent=39 // pred_fallthru
          _
        // Predicated region
        $region49: #{tpu_custom_call.1} parent=39 // pred_check
          %p249 = pneg %p107
        $region50: #{tpu_custom_call.1} parent=39 // pred_check_branch
          %251 = sbr.rel (%p249) target = $region52
        $region51: #{tpu_custom_call.1} parent=39 // pred_region
          %253 = dma.done [#allocation6], 1024
        $region52: #{tpu_custom_call.1} parent=39 // pred_fallthru
          _
        %s254 = sand.u32 %s31, 1
        %s255 = scalar_lea.sflag [#allocation3], %s254
        %s256 = sand.u32 %s31, 1
        %s257 = smul.addr %s256, 16
        %s258 = scalar_lea.vmem [#allocation2], %s257
        %p259 = pneg %p44
        %p260 = pneg %p41
        %p261 = pneg %p65
        %p262 = pneg %p62
        %p263 = pneg %p86
        %p264 = pneg %p83
        %p265 = pneg %p107
        %p266 = pneg %p104
        %p267 = pneg %p128
        %p268 = pneg %p125
        %p269 = pneg %p154
        %p270 = pneg %p151
        %s271 = sand.u32 %s141, 1
        %s272 = scalar_lea.sflag [#allocation4], %s271
        %s273 = sand.u32 %s141, 1
        %s274 = smul.addr %s273, 8
        %s275 = scalar_lea.vmem [#allocation8], %s274
        %v276 = vld [vmem:[%s238] sm:$0xff]
        %v277 = vld [vmem:[%s238 + $0x8] sm:$0xff]
        %v278 = vpack.c.bf16 %v276, %v276
        %v279 = vpack.c.bf16 %v277, %v277
        %v280 = vld [vmem:[#allocation5] sm:$0xf]
        %v281 = vld [vmem:[#allocation5 + $0x4] sm:$0xf]
        %v282 = vld [vmem:[#allocation5 + $0x8] sm:$0xf]
        %v283 = vld [vmem:[#allocation5 + $0xc] sm:$0xf]
        %v284 = vld [vmem:[#allocation5 + $0x10] sm:$0xf]
        %v285 = vld [vmem:[#allocation5 + $0x14] sm:$0xf]
        %v286 = vld [vmem:[#allocation5 + $0x18] sm:$0xf]
        %v287 = vld [vmem:[#allocation5 + $0x1c] sm:$0xf]
        %v288 = vld [vmem:[#allocation5 + $0x20] sm:$0xf]
        %v289 = vld [vmem:[#allocation5 + $0x24] sm:$0xf]
        %v290 = vld [vmem:[#allocation5 + $0x28] sm:$0xf]
        %v291 = vld [vmem:[#allocation5 + $0x2c] sm:$0xf]
        %v292 = vld [vmem:[#allocation5 + $0x30] sm:$0xf]
        %v293 = vld [vmem:[#allocation5 + $0x34] sm:$0xf]
        %v294 = vld [vmem:[#allocation5 + $0x38] sm:$0xf]
        %v295 = vld [vmem:[#allocation5 + $0x3c] sm:$0xf]
        %v296 = vld [vmem:[#allocation5 + $0x40] sm:$0xf]
        %v297 = vld [vmem:[#allocation5 + $0x44] sm:$0xf]
        %v298 = vld [vmem:[#allocation5 + $0x48] sm:$0xf]
        %v299 = vld [vmem:[#allocation5 + $0x4c] sm:$0xf]
        %v300 = vld [vmem:[#allocation5 + $0x50] sm:$0xf]
        %v301 = vld [vmem:[#allocation5 + $0x54] sm:$0xf]
        %v302 = vld [vmem:[#allocation5 + $0x58] sm:$0xf]
        %v303 = vld [vmem:[#allocation5 + $0x5c] sm:$0xf]
        %v304 = vld [vmem:[#allocation5 + $0x60] sm:$0xf]
        %v305 = vld [vmem:[#allocation5 + $0x64] sm:$0xf]
        %v306 = vld [vmem:[#allocation5 + $0x68] sm:$0xf]
        %v307 = vld [vmem:[#allocation5 + $0x6c] sm:$0xf]
        %v308 = vld [vmem:[#allocation5 + $0x70] sm:$0xf]
        %v309 = vld [vmem:[#allocation5 + $0x74] sm:$0xf]
        %v310 = vld [vmem:[#allocation5 + $0x78] sm:$0xf]
        %v311 = vld [vmem:[#allocation5 + $0x7c] sm:$0xf]
        %v312 = vld [vmem:[%s2] sm:$0x1]
        %v314 = vperm.slane %v312, 0
        %v348 = vunpack.c.l.b16 %v280
        %v349 = vunpack.c.l.b16 %v281
        %v350 = vunpack.c.l.b16 %v282
        %v351 = vunpack.c.l.b16 %v283
        %v352 = vunpack.c.l.b16 %v284
        %v353 = vunpack.c.l.b16 %v285
        %v354 = vunpack.c.l.b16 %v286
        %v355 = vunpack.c.l.b16 %v287
        %v356 = vunpack.c.l.b16 %v288
        %v357 = vunpack.c.l.b16 %v289
        %v358 = vunpack.c.l.b16 %v290
        %v359 = vunpack.c.l.b16 %v291
        %v360 = vunpack.c.l.b16 %v292
        %v361 = vunpack.c.l.b16 %v293
        %v362 = vunpack.c.l.b16 %v294
        %v363 = vunpack.c.l.b16 %v295
        %v364 = vunpack.c.l.b16 %v296
        %v365 = vunpack.c.l.b16 %v297
        %v366 = vunpack.c.l.b16 %v298
        %v367 = vunpack.c.l.b16 %v299
        %v368 = vunpack.c.l.b16 %v300
        %v369 = vunpack.c.l.b16 %v301
        %v370 = vunpack.c.l.b16 %v302
        %v371 = vunpack.c.l.b16 %v303
        %v372 = vunpack.c.l.b16 %v304
        %v373 = vunpack.c.l.b16 %v305
        %v374 = vunpack.c.l.b16 %v306
        %v375 = vunpack.c.l.b16 %v307
        %v376 = vunpack.c.l.b16 %v308
        %v377 = vunpack.c.l.b16 %v309
        %v378 = vunpack.c.l.b16 %v310
        %v379 = vunpack.c.l.b16 %v311
        %v380 = vpack.c.b16 %v349, %v348
        %v381 = vpack.c.b16 %v351, %v350
        %v382 = vpack.c.b16 %v353, %v352
        %v383 = vpack.c.b16 %v355, %v354
        %v384 = vpack.c.b16 %v357, %v356
        %v385 = vpack.c.b16 %v359, %v358
        %v386 = vpack.c.b16 %v361, %v360
        %v387 = vpack.c.b16 %v363, %v362
        %v388 = vpack.c.b16 %v365, %v364
        %v389 = vpack.c.b16 %v367, %v366
        %v390 = vpack.c.b16 %v369, %v368
        %v391 = vpack.c.b16 %v371, %v370
        %v392 = vpack.c.b16 %v373, %v372
        %v393 = vpack.c.b16 %v375, %v374
        %v394 = vpack.c.b16 %v377, %v376
        %v395 = vpack.c.b16 %v379, %v378
        %412 = vmatpush.bf16.msra.mxu0 %v387
        %413 = vmatpush.bf16.msra.mxu0 %v386
        %414 = vmatpush.bf16.msra.mxu0 %v385
        %415 = vmatpush.bf16.msra.mxu0 %v384
        %416 = vmatpush.bf16.msra.mxu0 %v383
        %417 = vmatpush.bf16.msra.mxu0 %v382
        %418 = vmatpush.bf16.msra.mxu0 %v381
        %419 = vmatpush.bf16.msra.mxu0 %v380
        %420 = vmatmul.bf16.gmra.mxu0 %v278
        %v421 = vpop.f32.mrf.mxu0
        %v422 = vadd.f32 %v314, %v421
        %v423 = vpop.f32.mrf.mxu0
        %424 = vdwg.mxu0
        %425 = vmatpush.bf16.msra.mxu0 %v395
        %426 = vmatpush.bf16.msra.mxu0 %v394
        %427 = vmatpush.bf16.msra.mxu0 %v393
        %428 = vmatpush.bf16.msra.mxu0 %v392
        %429 = vmatpush.bf16.msra.mxu0 %v391
        %430 = vmatpush.bf16.msra.mxu0 %v390
        %431 = vmatpush.bf16.msra.mxu0 %v389
        %432 = vmatpush.bf16.msra.mxu0 %v388
        %433 = vmatmul.bf16.gmra.mxu0 %v279
        %v434 = vpop.f32.mrf.mxu0
        %v435 = vadd.f32 %v422, %v434
        %v436 = vpop.f32.mrf.mxu0
        %437 = vdwg.mxu0
        %v438 = vmax.f32 %v435, 0.0
        %v439 = vpack.c.bf16 %v438, %v438
        %v440 = vld [vmem:[#allocation7] sm:$0xf]
        %v441 = vld [vmem:[#allocation7 + $0x4] sm:$0xf]
        %v442 = vld [vmem:[#allocation7 + $0x8] sm:$0xf]
        %v443 = vld [vmem:[#allocation7 + $0xc] sm:$0xf]
        %v444 = vld [vmem:[#allocation7 + $0x10] sm:$0xf]
        %v445 = vld [vmem:[#allocation7 + $0x14] sm:$0xf]
        %v446 = vld [vmem:[#allocation7 + $0x18] sm:$0xf]
        %v447 = vld [vmem:[#allocation7 + $0x1c] sm:$0xf]
        %v448 = vld [vmem:[#allocation7 + $0x20] sm:$0xf]
        %v449 = vld [vmem:[#allocation7 + $0x24] sm:$0xf]
        %v450 = vld [vmem:[#allocation7 + $0x28] sm:$0xf]
        %v451 = vld [vmem:[#allocation7 + $0x2c] sm:$0xf]
        %v452 = vld [vmem:[#allocation7 + $0x30] sm:$0xf]
        %v453 = vld [vmem:[#allocation7 + $0x34] sm:$0xf]
        %v454 = vld [vmem:[#allocation7 + $0x38] sm:$0xf]
        %v455 = vld [vmem:[#allocation7 + $0x3c] sm:$0xf]
        %v456 = vld [vmem:[%s4] sm:$0x1]
        %v458 = vperm.slane %v456, 0
        %v476 = vunpack.c.l.b16 %v440
        %v477 = vunpack.c.l.b16 %v441
        %v478 = vunpack.c.l.b16 %v442
        %v479 = vunpack.c.l.b16 %v443
        %v480 = vunpack.c.l.b16 %v444
        %v481 = vunpack.c.l.b16 %v445
        %v482 = vunpack.c.l.b16 %v446
        %v483 = vunpack.c.l.b16 %v447
        %v484 = vunpack.c.l.b16 %v448
        %v485 = vunpack.c.l.b16 %v449
        %v486 = vunpack.c.l.b16 %v450
        %v487 = vunpack.c.l.b16 %v451
        %v488 = vunpack.c.l.b16 %v452
        %v489 = vunpack.c.l.b16 %v453
        %v490 = vunpack.c.l.b16 %v454
        %v491 = vunpack.c.l.b16 %v455
        %v492 = vpack.c.b16 %v477, %v476
        %v493 = vpack.c.b16 %v479, %v478
        %v494 = vpack.c.b16 %v481, %v480
        %v495 = vpack.c.b16 %v483, %v482
        %v496 = vpack.c.b16 %v485, %v484
        %v497 = vpack.c.b16 %v487, %v486
        %v498 = vpack.c.b16 %v489, %v488
        %v499 = vpack.c.b16 %v491, %v490
        %508 = vmatpush.bf16.msra.mxu0 %v499
        %509 = vmatpush.bf16.msra.mxu0 %v498
        %510 = vmatpush.bf16.msra.mxu0 %v497
        %511 = vmatpush.bf16.msra.mxu0 %v496
        %512 = vmatpush.bf16.msra.mxu0 %v495
        %513 = vmatpush.bf16.msra.mxu0 %v494
        %514 = vmatpush.bf16.msra.mxu0 %v493
        %515 = vmatpush.bf16.msra.mxu0 %v492
        %516 = vmatmul.bf16.gmra.mxu0 %v439
        %v517 = vpop.f32.mrf.mxu0
        %v518 = vadd.f32 %v458, %v517
        %v519 = vpop.f32.mrf.mxu0
        %520 = vdwg.mxu0
        %521 = vmax.xlane.f32.xlu0 %v518
        %v522 = vpop.xlane.xlu0 %521
        %v523 = vsub.f32 %v518, %v522
        %v524 = vmul.f32 %v523, 1.442695
        %v525 = vpow.pop %v524
        %526 = vadd.xlane.f32.xlu0 %v525
        %v527 = vpop.xlane.xlu0 %526
        %v528 = vrcp.pop %v527
        %v529 = vmul.f32 %v525, %v528
        %530 = vst [vmem:[%s275] sm:$0xff] %v529
        %s531 = sand.u32 %s141, 1
        %s532 = scalar_lea.sflag [#allocation4], %s531
        %s533 = sand.u32 %s141, 1
        %s534 = smul.addr %s533, 8
        %s535 = scalar_lea.vmem [#allocation8], %s534
        // Predicated region
        $region53: #{tpu_custom_call.1} parent=39 // pred_check
          %p536 = pneg %p151
        $region54: #{tpu_custom_call.1} parent=39 // pred_check_branch
          %538 = sbr.rel (%p536) target = $region56
        $region55: #{tpu_custom_call.1} parent=39 // pred_region
          %540 = vsyncadd %s532, 0
          %s541 = smul.addr %s23, 8
          %s542 = scalar_lea.hbm %s5, %s541
          %s544 = sshll.u32 %s535, 4
          %s545 = int_to_ptr.vmem [resolvable:$true] %s544
          %s546 = sshll.u32 %s542, 4
          %s547 = int_to_ptr.hbm [resolvable:$true] %s546
          %549 = dma.vmem_to_hbm [thread:$0]  %s545, 128, %s547, %s532
        $region56: #{tpu_custom_call.1} parent=39 // pred_fallthru
          _
      $region40: #{tpu_custom_call.1} parent=5 // pred_fallthru
        _
      %p550 = scmp.le.s32.totalorder 2, %s18
      // Predicated region
      $region57: #{tpu_custom_call.1} parent=5 // pred_check
        %p551 = pneg %p550
      $region58: #{tpu_custom_call.1} parent=5 // pred_check_branch
        %553 = sbr.rel (%p551) target = $region60
      $region59: #{tpu_custom_call.1} parent=5 // pred_region
        %s554 = ssub.s32 %s18, 2
        // Predicated region
        $region61: #{tpu_custom_call.1} parent=59 // pred_check
          %p555 = pneg %p157
        $region62: #{tpu_custom_call.1} parent=59 // pred_check_branch
          %557 = sbr.rel (%p555) target = $region64
        $region63: #{tpu_custom_call.1} parent=59 // pred_region
          %s558 = sand.u32 %s142, 1
          %s559 = scalar_lea.sflag [#allocation4], %s558
          %s560 = sand.u32 %s142, 1
          %s561 = smul.addr %s560, 8
          %s562 = scalar_lea.vmem [#allocation8], %s561
          %564 = dma.done %s559, 128
        $region64: #{tpu_custom_call.1} parent=59 // pred_fallthru
          _
      $region60: #{tpu_custom_call.1} parent=5 // pred_fallthru
        _
    $region6: #{tpu_custom_call.1} parent=1 // loop_footer
      %s22 = sadd.s32 1, %s18
    $region7: #{tpu_custom_call.1} parent=1 // loop_footer_branch
      %17 = sbr.rel target = $region3
    $region8: #{tpu_custom_call.1} parent=1 // loop_exit
      _
    %565 = vsyncpa [#allocation3], 1
    %s566 = scalar_lea.sflag [#allocation3], 1
    %567 = vsyncpa %s566, 1
    %568 = vsyncpa [#allocation6], 1
    %569 = vsyncpa [#allocation4], 1
    %s570 = scalar_lea.sflag [#allocation4], 1
    %571 = vsyncpa %s570, 1

</llo_original>
